<compile_context>
chip_gen: v7x
topology: tpu7x:2x2x1
jax: 0.10.0
libtpu: 0.0.40
codegen_flags: <defaults>
</compile_context>

<pallas_src>
import jax
import jax.numpy as jnp
from jax.experimental import pallas as pl
from jax.experimental.pallas import tpu as pltpu


# ----------------------------------------------------------------------------
# Kernel 1: per-layer feature transform   HW = (h @ W)  (bf16 out, f32 acc)
# ----------------------------------------------------------------------------
def _feature_transform_kernel(h_ref, w_ref, out_ref):
    hw = jnp.dot(h_ref[...].astype(jnp.bfloat16), w_ref[...],
                 preferred_element_type=jnp.float32)
    out_ref[...] = hw.astype(jnp.bfloat16)


def feature_transform(h, w_bf16, *, tm):
    n, f_in = h.shape
    f_out = w_bf16.shape[1]
    return pl.pallas_call(
        _feature_transform_kernel,
        out_shape=jax.ShapeDtypeStruct((n, f_out), jnp.bfloat16),
        grid_spec=pltpu.PrefetchScalarGridSpec(
            num_scalar_prefetch=0,
            grid=(n // tm,),
            in_specs=[
                pl.BlockSpec((tm, f_in), lambda i: (i, 0)),     # row tile of h
                pl.BlockSpec((f_in, f_out), lambda i: (0, 0)),  # W pinned
            ],
            out_specs=pl.BlockSpec((tm, f_out), lambda i: (i, 0)),
        ),
        compiler_params=pltpu.CompilerParams(
            dimension_semantics=("parallel",),
            vmem_limit_bytes=32 * 1024 * 1024),
    )(h, w_bf16)


# ----------------------------------------------------------------------------
# Kernel 2: aggregation   out = relu(A_hat @ HW + b)
#   grid (N/tm, N/tk); A tiles streamed, HW [N,64] resident in VMEM,
#   f32 accumulator scratch with pl.when init/finalize.
# ----------------------------------------------------------------------------
def _gcn_aggregate_kernel(a_ref, hw_ref, b_ref, out_ref, acc_ref):
    k = pl.program_id(1)
    nk = pl.num_programs(1)

    @pl.when(k == 0)
    def _():
        acc_ref[...] = jnp.zeros_like(acc_ref)

    tk = a_ref.shape[1]
    start = pl.multiple_of(k * tk, tk)
    acc_ref[...] += jnp.dot(a_ref[...], hw_ref[pl.ds(start, tk), :],
                            preferred_element_type=jnp.float32)

    @pl.when(k == nk - 1)
    def _():
        out_ref[...] = jnp.maximum(acc_ref[...] + b_ref[...], 0.0)


def gcn_aggregate(a_bf16, hw_bf16, bias, *, tm, tk):
    n = a_bf16.shape[0]
    f = hw_bf16.shape[1]
    return pl.pallas_call(
        _gcn_aggregate_kernel,
        out_shape=jax.ShapeDtypeStruct((n, f), jnp.float32),
        grid_spec=pltpu.PrefetchScalarGridSpec(
            num_scalar_prefetch=0,
            grid=(n // tm, n // tk),
            in_specs=[
                pl.BlockSpec((tm, tk), lambda i, k: (i, k)),  # A tile streamed
                pl.BlockSpec((n, f), lambda i, k: (0, 0)),    # HW resident
                pl.BlockSpec((1, f), lambda i, k: (0, 0)),    # bias resident
            ],
            out_specs=pl.BlockSpec((tm, f), lambda i, k: (i, 0)),
            scratch_shapes=[pltpu.VMEM((tm, f), jnp.float32)],
        ),
        compiler_params=pltpu.CompilerParams(
            dimension_semantics=("parallel", "arbitrary"),
            vmem_limit_bytes=32 * 1024 * 1024),
    )(a_bf16, hw_bf16, bias)


# ----------------------------------------------------------------------------
# Kernel 3: head  (global_mean_pool as P @ h, Linear(64,32)+ReLU, Linear(32,1))
# ----------------------------------------------------------------------------
def _head_kernel(p_ref, h_ref, w4_ref, b4_ref, w5_ref, b5_ref, out_ref):
    f32 = jnp.float32
    bf16 = jnp.bfloat16
    g = jnp.dot(p_ref[...], h_ref[...].astype(bf16),
                preferred_element_type=f32)                           # [G, 64]
    g = jnp.dot(g.astype(bf16), w4_ref[...],
                preferred_element_type=f32) + b4_ref[...]
    g = jnp.maximum(g, 0.0)
    out_ref[...] = jnp.dot(g.astype(bf16), w5_ref[...],
                           preferred_element_type=f32) + b5_ref[...]


# ----------------------------------------------------------------------------
# Full forward
# ----------------------------------------------------------------------------
def gcn_forward_pallas(a_hat, x, params, pool_mat, *, tm=128, tk=128):
    (w1, b1, w2, b2, w3, b3, w4, b4, w5, b5) = params
    n = x.shape[0]
    assert n % tm == 0 and n % tk == 0, "pick tm/tk dividing the node count"

    bf16 = jnp.bfloat16
    a_bf = a_hat.astype(bf16)          # halves VMEM/HBM traffic of the NxN A
    p_bf = pool_mat.astype(bf16)

    h = x
    for (w, b) in ((w1, b1), (w2, b2), (w3, b3)):
        hw = feature_transform(h, w.astype(bf16), tm=tm)     # [N, 64] bf16
        h = gcn_aggregate(a_bf, hw, b, tm=tm, tk=tk)         # [N, 64] f32

    n_graphs = pool_mat.shape[0]
    vmem = pl.BlockSpec(memory_space=pltpu.MemorySpace.VMEM)
    out = pl.pallas_call(
        _head_kernel,
        out_shape=jax.ShapeDtypeStruct((n_graphs, 1), jnp.float32),
        in_specs=[vmem] * 6,
        out_specs=vmem,
    )(p_bf, h, w4.astype(bf16), b4, w5.astype(bf16), b5)
    return out


# ----------------------------------------------------------------------------
# Glue: dense normalized adjacency (GCNConv gcn_norm) and mean-pool matrix.
# ----------------------------------------------------------------------------
def build_norm_adj(edge_index, edge_weight, n_nodes):
    src = edge_index[0]
    dst = edge_index[1]
    loop = jnp.arange(n_nodes, dtype=src.dtype)
    src = jnp.concatenate([src, loop])
    dst = jnp.concatenate([dst, loop])
    w = jnp.concatenate([edge_weight, jnp.ones((n_nodes,), jnp.float32)])
    deg = jnp.zeros((n_nodes,), jnp.float32).at[dst].add(w)
    dinv = jnp.where(deg > 0, 1.0 / jnp.sqrt(deg), 0.0)
    norm = dinv[src] * w * dinv[dst]
    a_hat = jnp.zeros((n_nodes, n_nodes), jnp.float32).at[dst, src].add(norm)
    return a_hat


def build_pool_matrix(batch, n_graphs):
    onehot = (batch[None, :] == jnp.arange(n_graphs)[:, None]).astype(jnp.float32)
    counts = jnp.maximum(onehot.sum(axis=1, keepdims=True), 1.0)
    return onehot / counts                                    # [G, N]


# ----------------------------------------------------------------------------
# References
# ----------------------------------------------------------------------------
def gcn_forward_ref_mixed(a_hat, x, params, pool_mat):
    """Plain-JAX reference using the same bf16-matmul / f32-accumulate scheme."""
    (w1, b1, w2, b2, w3, b3, w4, b4, w5, b5) = params
    bf16, f32 = jnp.bfloat16, jnp.float32
    a = a_hat.astype(bf16)
    p = pool_mat.astype(bf16)
    h = x
    for (w, b) in ((w1, b1), (w2, b2), (w3, b3)):
        hw = jnp.dot(h.astype(bf16), w.astype(bf16),
                     preferred_element_type=f32).astype(bf16)
        h = jnp.maximum(jnp.dot(a, hw, preferred_element_type=f32) + b, 0.0)
    g = jnp.dot(p, h.astype(bf16), preferred_element_type=f32)
    g = jnp.maximum(jnp.dot(g.astype(bf16), w4.astype(bf16),
                            preferred_element_type=f32) + b4, 0.0)
    return jnp.dot(g.astype(bf16), w5.astype(bf16),
                   preferred_element_type=f32) + b5


def gcn_forward_ref_f32(a_hat, x, params, pool_mat):
    (w1, b1, w2, b2, w3, b3, w4, b4, w5, b5) = params
    h = jnp.maximum(a_hat @ (x @ w1) + b1, 0.0)
    h = jnp.maximum(a_hat @ (h @ w2) + b2, 0.0)
    h = jnp.maximum(a_hat @ (h @ w3) + b3, 0.0)
    g = pool_mat @ h
    g = jnp.maximum(g @ w4 + b4, 0.0)
    return g @ w5 + b5


# ----------------------------------------------------------------------------
# Deterministic parameter init (shapes from GCN.__init__)
# ----------------------------------------------------------------------------
def init_params(key, n_node_features):
    def lin_init(k, fan_in, fan_out):
        kw, kb = jax.random.split(k)
        scale = 1.0 / jnp.sqrt(jnp.float32(fan_in))
        w = jax.random.uniform(kw, (fan_in, fan_out), jnp.float32, -scale, scale)
        b = jax.random.uniform(kb, (1, fan_out), jnp.float32, -scale, scale)
        return w, b

    keys = jax.random.split(key, 5)
    w1, b1 = lin_init(keys[0], n_node_features, 64)   # conv1
    w2, b2 = lin_init(keys[1], 64, 64)                # conv2
    w3, b3 = lin_init(keys[2], 64, 64)                # conv3
    w4, b4 = lin_init(keys[3], 64, 32)                # lin
    w5, b5 = lin_init(keys[4], 32, 1)                 # lin2
    return (w1, b1, w2, b2, w3, b3, w4, b4, w5, b5)


if __name__ == "__main__":
    key = jax.random.PRNGKey(0)
    k_param, k_edge_s, k_edge_d, k_w, k_x = jax.random.split(key, 5)

    n_node_features = 8
    n_graphs = 2
    nodes_per_graph = 128
    n_nodes = n_graphs * nodes_per_graph      # 256
    n_edges = 1024
    tm = tk = 128                             # grid (2, 2) for aggregation

    # Node features
    x = jax.random.normal(k_x, (n_nodes, n_node_features), jnp.float32)

    # Random directed edges within each graph (PyG-style batching)
    graph_of_edge = jnp.repeat(jnp.arange(n_graphs), n_edges // n_graphs)
    src_local = jax.random.randint(k_edge_s, (n_edges,), 0, nodes_per_graph)
    dst_local = jax.random.randint(k_edge_d, (n_edges,), 0, nodes_per_graph)
    offset = graph_of_edge * nodes_per_graph
    edge_index = jnp.stack([src_local + offset, dst_local + offset]).astype(jnp.int32)
    edge_weight = jax.random.uniform(k_w, (n_edges,), jnp.float32, 0.1, 1.0)

    # Batch assignment vector (node -> graph id)
    batch = jnp.repeat(jnp.arange(n_graphs), nodes_per_graph).astype(jnp.int32)

    params = init_params(k_param, n_node_features)
    a_hat = build_norm_adj(edge_index, edge_weight, n_nodes)
    pool_mat = build_pool_matrix(batch, n_graphs)

    out = gcn_forward_pallas(a_hat, x, params, pool_mat, tm=tm, tk=tk)
    out = jax.block_until_ready(out)
    assert out.shape == (n_graphs, 1)

    ref_mixed = gcn_forward_ref_mixed(a_hat, x, params, pool_mat)
    ref_f32 = gcn_forward_ref_f32(a_hat, x, params, pool_mat)
    assert jnp.allclose(out, ref_mixed, atol=1e-2, rtol=1e-2), (out, ref_mixed)
    assert jnp.allclose(out, ref_f32, atol=5e-2, rtol=5e-2), (out, ref_f32)

    print("KERNEL_OK")
</pallas_src>

<mosaic_0001>
module attributes {stable_mosaic.version = 11 : i64} {
  func.func @_feature_transform_kernel(%arg0: i32, %arg1: memref<128x8xf32, #tpu.memory_space<vmem>>, %arg2: memref<8x64xbf16, #tpu.memory_space<vmem>>, %arg3: memref<128x64xbf16, #tpu.memory_space<vmem>>) attributes {dimension_semantics = [#tpu.dimension_semantics<parallel>], iteration_bounds = array<i64: 2>, scalar_prefetch = 0 : i64, scratch_operands = 0 : i64, tpu.core_type = #tpu.core_type<tc>, window_params = [{transform_indices = @transform_0, window_bounds = array<i64: 128, 8>}, {pipeline_mode = #tpu.pipeline_mode<synchronous>, transform_indices = @transform_1, window_bounds = array<i64: 8, 64>}, {transform_indices = @transform_2, window_bounds = array<i64: 128, 64>}]} {
    %c0 = arith.constant 0 : index
    %c0_0 = arith.constant 0 : index
    %0 = vector.load %arg1[%c0, %c0_0] : memref<128x8xf32, #tpu.memory_space<vmem>>, vector<128x8xf32>
    %1 = arith.truncf %0 : vector<128x8xf32> to vector<128x8xbf16>
    %c0_1 = arith.constant 0 : index
    %c0_2 = arith.constant 0 : index
    %2 = vector.load %arg2[%c0_1, %c0_2] : memref<8x64xbf16, #tpu.memory_space<vmem>>, vector<8x64xbf16>
    %cst = arith.constant dense<0.000000e+00> : vector<128x64xf32>
    %3 = tpu.matmul %1, %2, %cst {dimension_numbers = #tpu.dot_dimension_numbers<[1], [0], [0], [1], [0, 0, 1, 1], [], []>} : vector<128x8xbf16>, vector<8x64xbf16>, vector<128x64xf32> -> vector<128x64xf32>
    %4 = arith.truncf %3 : vector<128x64xf32> to vector<128x64xbf16>
    %c0_3 = arith.constant 0 : index
    %c0_4 = arith.constant 0 : index
    %5 = vector.load %arg3[%c0_3, %c0_4] : memref<128x64xbf16, #tpu.memory_space<vmem>>, vector<128x64xbf16>
    tpu.vector_store %arg3[%c0_3, %c0_4], %4 {strides = array<i32>} : memref<128x64xbf16, #tpu.memory_space<vmem>>, vector<128x64xbf16>,
    return
  }
  func.func @transform_0(%arg0: i32) -> (i32, i32) {
    %c0_i32 = arith.constant 0 : i32
    %c0_i32_0 = arith.constant 0 : i32
    return %arg0, %c0_i32 : i32, i32
  }
  func.func @transform_1(%arg0: i32) -> (i32, i32) {
    %c0_i32 = arith.constant 0 : i32
    %c0_i32_0 = arith.constant 0 : i32
    %c0_i32_1 = arith.constant 0 : i32
    return %c0_i32, %c0_i32_0 : i32, i32
  }
  func.func @transform_2(%arg0: i32) -> (i32, i32) {
    %c0_i32 = arith.constant 0 : i32
    %c0_i32_0 = arith.constant 0 : i32
    return %arg0, %c0_i32 : i32, i32
  }
}

</mosaic_0001>

<llo_original>
// kernel: tpu_custom_call.1
$region0: #{tpu_custom_call.1}
  #allocation0 [shape = 'u32[]', space=smem, size = 0x4, offset = 0x4, fixed_abs, tag = 'smem constant byte address 0x4 - core index']
  #allocation1 [shape = 'u32[144,128]{1,0:T(1,128)}', space=vmem, size = 0x12000, scoped, tag = 'internal scratch']
  %s0 = inlined_call_operand.vmem [shape: f32[256,8], index: 0, kind: input, shape index: {}]
  %s1 = inlined_call_operand.vmem [shape: bf16[8,64], index: 1, kind: input, shape index: {}]
  %s2 = inlined_call_operand.vmem [shape: bf16[256,64], index: 2, kind: output, shape index: {}]
  %s3 = sld [smem:[#allocation0]]
  $region41: #{tpu_custom_call.1} parent=0
    _
  %s5 = ssub.s32 1, %s3
  %s6 = scalar_select 0, %s5, %s3
  loop: start=0, step=1, limit=4
  $region2: #{tpu_custom_call.1} parent=0 // loop_pre_header
    _
  $region3: #{tpu_custom_call.1} parent=0 // loop_header
    %s8 = sphi 0, %s12
    %p9 = scmp.ge.s32.totalorder %s8, 4
    %s18 = sphi 0, %s20
    %s21 = sphi 0, %s18
    %s22 = sphi 0, %s21
    %s38 = sphi 0, %s22
    %s42 = sphi 0, %s42
    %s44 = sphi 0, %s42
    %s45 = sphi 0, %s44
    %s59 = sphi 0, %s45
    %s65 = sphi 0, %s67
    %s68 = sphi 0, %s65
    %s69 = sphi 0, %s68
    %s85 = sphi 0, %s69
  $region4: #{tpu_custom_call.1} parent=0 // loop_header_branch
    %11 = sbr.rel (%p9) target = $region8
  $region5: #{tpu_custom_call.1} parent=0 // loop_body
    %s13 = ssub.s32 %s8, 1
    %s14 = ssub.s32 %s8, 2
    %s15 = sadd.s32 %s8, 1
    %s16 = ssub.s32 %s8, %s15
    %p17 = scmp.eq.s32.totalorder %s16, 0
    %s19 = sadd.s32 %s18, 1
    %s20 = scalar_select %p17, %s18, %s19
    %p23 = pneg %p17
    %p24 = scmp.eq.s32.totalorder %s8, 1
    %p25 = por %p23, %p24
    %p26 = scmp.ne.s32.totalorder %s18, %s21
    %p27 = scmp.eq.s32.totalorder %s8, 0
    %p28 = por %p26, %p27
    %p29 = scmp.ne.s32.totalorder %s18, %s21
    %p30 = scmp.eq.s32.totalorder %s13, 1
    %p31 = por %p29, %p30
    %p32 = scmp.ne.s32.totalorder %s21, %s22
    %p33 = scmp.eq.s32.totalorder %s13, 0
    %p34 = por %p32, %p33
    %p35 = scmp.ne.s32.totalorder %s21, %s22
    %p36 = scmp.eq.s32.totalorder %s14, 1
    %p37 = por %p35, %p36
    %p39 = scmp.ne.s32.totalorder %s22, %s38
    %p40 = scmp.eq.s32.totalorder %s14, 0
    %p41 = por %p39, %p40
    %s43 = sadd.s32 %s42, 1
    %p46 = scmp.eq.s32.totalorder %s8, 1
    %p47 = scmp.ne.s32.totalorder %s42, %s44
    %p48 = scmp.eq.s32.totalorder %s8, 0
    %p49 = por %p47, %p48
    %p50 = scmp.ne.s32.totalorder %s42, %s44
    %p51 = scmp.eq.s32.totalorder %s13, 1
    %p52 = por %p50, %p51
    %p53 = scmp.ne.s32.totalorder %s44, %s45
    %p54 = scmp.eq.s32.totalorder %s13, 0
    %p55 = por %p53, %p54
    %p56 = scmp.ne.s32.totalorder %s44, %s45
    %p57 = scmp.eq.s32.totalorder %s14, 1
    %p58 = por %p56, %p57
    %p60 = scmp.ne.s32.totalorder %s45, %s59
    %p61 = scmp.eq.s32.totalorder %s14, 0
    %p62 = por %p60, %p61
    %s63 = ssub.s32 %s8, %s15
    %p64 = scmp.eq.s32.totalorder %s63, 0
    %s66 = sadd.s32 %s65, 1
    %s67 = scalar_select %p64, %s65, %s66
    %p70 = pneg %p64
    %p71 = scmp.eq.s32.totalorder %s8, 1
    %p72 = por %p70, %p71
    %p73 = scmp.ne.s32.totalorder %s65, %s68
    %p74 = scmp.eq.s32.totalorder %s8, 0
    %p75 = por %p73, %p74
    %p76 = scmp.ne.s32.totalorder %s65, %s68
    %p77 = scmp.eq.s32.totalorder %s13, 1
    %p78 = por %p76, %p77
    %p79 = scmp.ne.s32.totalorder %s68, %s69
    %p80 = scmp.eq.s32.totalorder %s13, 0
    %p81 = por %p79, %p80
    %p82 = scmp.ne.s32.totalorder %s68, %s69
    %p83 = scmp.eq.s32.totalorder %s14, 1
    %p84 = por %p82, %p83
    %p86 = scmp.ne.s32.totalorder %s69, %s85
    %p87 = scmp.eq.s32.totalorder %s14, 0
    %p88 = por %p86, %p87
    %p89 = scmp.le.s32.totalorder 1, %s8
    %p90 = scmp.lt.s32.totalorder %s8, 3
    %p91 = pnand %p89, %p90
    %p92 = pneg %p91
    // Predicated region
    $region9: #{tpu_custom_call.1} parent=5 // pred_check
      _
    $region10: #{tpu_custom_call.1} parent=5 // pred_check_branch
      %94 = sbr.rel (%p91) target = $region12
    $region11: #{tpu_custom_call.1} parent=5 // pred_region
      %s95 = ssub.s32 %s8, 1
      // Predicated region
      $region13: #{tpu_custom_call.1} parent=11 // pred_check
        %p96 = pneg %p55
      $region14: #{tpu_custom_call.1} parent=11 // pred_check_branch
        %98 = sbr.rel (%p96) target = $region16
      $region15: #{tpu_custom_call.1} parent=11 // pred_region
        _
      $region16: #{tpu_custom_call.1} parent=11 // pred_fallthru
        _
    $region12: #{tpu_custom_call.1} parent=5 // pred_fallthru
      _
    %p99 = scmp.lt.s32.totalorder %s8, 2
    // Predicated region
    $region17: #{tpu_custom_call.1} parent=5 // pred_check
      %p100 = pneg %p99
    $region18: #{tpu_custom_call.1} parent=5 // pred_check_branch
      %102 = sbr.rel (%p100) target = $region20
    $region19: #{tpu_custom_call.1} parent=5 // pred_region
      // Predicated region
      $region21: #{tpu_custom_call.1} parent=19 // pred_check
        %p103 = pneg %p28
      $region22: #{tpu_custom_call.1} parent=19 // pred_check_branch
        %105 = sbr.rel (%p103) target = $region24
      $region23: #{tpu_custom_call.1} parent=19 // pred_region
        %s106 = smul.u32 16, %s8
        %p107 = scmp.lt.s32.totalorder %s106, 31
        %s108 = scalar_select %p107, %s106, 31
        %s109 = smul.addr %s108, 8
        %s110 = scalar_lea.vmem %s0, %s109
        %s111 = smul.u32 16, %s8
      $region24: #{tpu_custom_call.1} parent=19 // pred_fallthru
        _
    $region20: #{tpu_custom_call.1} parent=5 // pred_fallthru
      _
    %p112 = scmp.le.s32.totalorder 1, %s8
    %p113 = scmp.lt.s32.totalorder %s8, 3
    %p114 = pnand %p112, %p113
    %p115 = pneg %p114
    // Predicated region
    $region25: #{tpu_custom_call.1} parent=5 // pred_check
      _
    $region26: #{tpu_custom_call.1} parent=5 // pred_check_branch
      %117 = sbr.rel (%p114) target = $region28
    $region27: #{tpu_custom_call.1} parent=5 // pred_region
      %s118 = ssub.s32 %s8, 1
      %s119 = smul.u32 16, %s13
      %p120 = scmp.lt.s32.totalorder %s119, 31
      %s121 = scalar_select %p120, %s119, 31
      %s122 = smul.addr %s121, 8
      %s123 = scalar_lea.vmem %s0, %s122
      %p124 = pneg %p34
      %p125 = pneg %p31
      %p126 = pneg %p55
      %p127 = pneg %p52
      %p128 = pneg %p81
      %p129 = pneg %p78
      %s130 = smul.u32 16, %s13
      %p131 = scmp.lt.s32.totalorder %s130, 31
      %s132 = scalar_select %p131, %s130, 31
      %s133 = smul.addr %s132, 4
      %s134 = scalar_lea.vmem %s2, %s133
      %s135 = smul.u32 16, %s13
      %p136 = scmp.lt.s32.totalorder %s135, 31
      %s137 = scalar_select %p136, %s135, 31
      %s138 = smul.addr %s137, 8
      %s139 = scalar_lea.vmem %s0, %s138
      %s140 = smul.u32 16, %s13
      %s141 = smul.u32 16, %s13
      %p142 = scmp.lt.s32.totalorder %s141, 31
      %s143 = scalar_select %p142, %s141, 31
      %s144 = smul.addr %s143, 4
      %s145 = scalar_lea.vmem %s2, %s144
      %s146 = smul.u32 16, %s13
      %v148 = vld [vmem:[%s139] sm:$0xff]
      %v149 = vld [vmem:[%s139 + $0x8] sm:$0xff]
      %v150 = vld [vmem:[%s139 + $0x10] sm:$0xff]
      %v151 = vld [vmem:[%s139 + $0x18] sm:$0xff]
      %v152 = vld [vmem:[%s139 + $0x20] sm:$0xff]
      %v153 = vld [vmem:[%s139 + $0x28] sm:$0xff]
      %v154 = vld [vmem:[%s139 + $0x30] sm:$0xff]
      %v155 = vld [vmem:[%s139 + $0x38] sm:$0xff]
      %v156 = vld [vmem:[%s139 + $0x40] sm:$0xff]
      %v157 = vld [vmem:[%s139 + $0x48] sm:$0xff]
      %v158 = vld [vmem:[%s139 + $0x50] sm:$0xff]
      %v159 = vld [vmem:[%s139 + $0x58] sm:$0xff]
      %v160 = vld [vmem:[%s139 + $0x60] sm:$0xff]
      %v161 = vld [vmem:[%s139 + $0x68] sm:$0xff]
      %v162 = vld [vmem:[%s139 + $0x70] sm:$0xff]
      %v163 = vld [vmem:[%s139 + $0x78] sm:$0xff]
      %v164 = vpack.c.bf16 %v149, %v148
      %v165 = vpack.c.bf16 %v151, %v150
      %v166 = vpack.c.bf16 %v153, %v152
      %v167 = vpack.c.bf16 %v155, %v154
      %v168 = vpack.c.bf16 %v157, %v156
      %v169 = vpack.c.bf16 %v159, %v158
      %v170 = vpack.c.bf16 %v161, %v160
      %v171 = vpack.c.bf16 %v163, %v162
      %v172 = vld [vmem:[%s1] sm:$0xf]
      %vm173 = vcmask 64512
      %v175 = vsel %vm173, %v164, 0
      %v178 = vsel %vm173, %v165, 0
      %v181 = vsel %vm173, %v166, 0
      %v184 = vsel %vm173, %v167, 0
      %v187 = vsel %vm173, %v168, 0
      %v190 = vsel %vm173, %v169, 0
      %v193 = vsel %vm173, %v170, 0
      %v196 = vsel %vm173, %v171, 0
      %vm198 = vcmask 1043456
      %v200 = vsel %vm198, %v172, 0
      %202 = vmatprep.subr.bf16.mxu0 0
      %203 = vmatpush1.bf16.msra.mxu0 %v200
      %204 = vmatprep.subr.bf16.mxu0 0
      %205 = vmatpush1.bf16.msra.mxu0 0
      %206 = vmatprep.subr.bf16.mxu0 0
      %207 = vmatpush1.bf16.msra.mxu0 0
      %208 = vmatprep.subr.bf16.mxu0 0
      %209 = vmatpush1.bf16.msra.mxu0 0
      %210 = vmatprep.subr.bf16.mxu0 0
      %211 = vmatpush1.bf16.msra.mxu0 0
      %212 = vmatprep.subr.bf16.mxu0 0
      %213 = vmatpush1.bf16.msra.mxu0 0
      %214 = vmatprep.subr.bf16.mxu0 0
      %215 = vmatpush1.bf16.msra.mxu0 0
      %216 = vmatprep.subr.bf16.mxu0 0
      %217 = vmatpush1.bf16.msra.mxu0 0
      %218 = vmatprep.subr.bf16.mxu0 0
      %219 = vmatpush1.bf16.msra.mxu0 0
      %220 = vmatprep.subr.bf16.mxu0 0
      %221 = vmatpush1.bf16.msra.mxu0 0
      %222 = vmatprep.subr.bf16.mxu0 0
      %223 = vmatpush1.bf16.msra.mxu0 0
      %224 = vmatprep.subr.bf16.mxu0 0
      %225 = vmatpush1.bf16.msra.mxu0 0
      %226 = vmatprep.subr.bf16.mxu0 0
      %227 = vmatpush1.bf16.msra.mxu0 0
      %228 = vmatprep.subr.bf16.mxu0 0
      %229 = vmatpush1.bf16.msra.mxu0 0
      %230 = vmatprep.subr.bf16.mxu0 0
      %231 = vmatpush1.bf16.msra.mxu0 0
      %232 = vmatprep.subr.bf16.mxu0 0
      %233 = vmatpush1.bf16.msra.mxu0 0
      %234 = vmatprep.mubr.bf16.mxu0 0
      %235 = vmatmul.mubr.bf16.gmra.mrb[0].mxu0 %v175
      %v236 = vpop.f32.mrb[0].mxu0
      %v237 = vadd.f32 0.0, %v236
      %v238 = vpop.f32.mrb[0].mxu0
      %v239 = vpop.f32.mrb[0].mxu0
      %v240 = vadd.f32 0.0, %v239
      %v241 = vpop.f32.mrb[0].mxu0
      %242 = vmatprep.mubr.bf16.mxu0 0
      %243 = vmatmul.mubr.bf16.gmra.mrb[0].mxu0 %v178
      %v244 = vpop.f32.mrb[0].mxu0
      %v245 = vadd.f32 0.0, %v244
      %v246 = vpop.f32.mrb[0].mxu0
      %v247 = vpop.f32.mrb[0].mxu0
      %v248 = vadd.f32 0.0, %v247
      %v249 = vpop.f32.mrb[0].mxu0
      %250 = vmatprep.mubr.bf16.mxu0 0
      %251 = vmatmul.mubr.bf16.gmra.mrb[0].mxu0 %v181
      %v252 = vpop.f32.mrb[0].mxu0
      %v253 = vadd.f32 0.0, %v252
      %v254 = vpop.f32.mrb[0].mxu0
      %v255 = vpop.f32.mrb[0].mxu0
      %v256 = vadd.f32 0.0, %v255
      %v257 = vpop.f32.mrb[0].mxu0
      %258 = vmatprep.mubr.bf16.mxu0 0
      %259 = vmatmul.mubr.bf16.gmra.mrb[0].mxu0 %v184
      %v260 = vpop.f32.mrb[0].mxu0
      %v261 = vadd.f32 0.0, %v260
      %v262 = vpop.f32.mrb[0].mxu0
      %v263 = vpop.f32.mrb[0].mxu0
      %v264 = vadd.f32 0.0, %v263
      %v265 = vpop.f32.mrb[0].mxu0
      %266 = vmatprep.mubr.bf16.mxu0 0
      %267 = vmatmul.mubr.bf16.gmra.mrb[0].mxu0 %v187
      %v268 = vpop.f32.mrb[0].mxu0
      %v269 = vadd.f32 0.0, %v268
      %v270 = vpop.f32.mrb[0].mxu0
      %v271 = vpop.f32.mrb[0].mxu0
      %v272 = vadd.f32 0.0, %v271
      %v273 = vpop.f32.mrb[0].mxu0
      %274 = vmatprep.mubr.bf16.mxu0 0
      %275 = vmatmul.mubr.bf16.gmra.mrb[0].mxu0 %v190
      %v276 = vpop.f32.mrb[0].mxu0
      %v277 = vadd.f32 0.0, %v276
      %v278 = vpop.f32.mrb[0].mxu0
      %v279 = vpop.f32.mrb[0].mxu0
      %v280 = vadd.f32 0.0, %v279
      %v281 = vpop.f32.mrb[0].mxu0
      %282 = vmatprep.mubr.bf16.mxu0 0
      %283 = vmatmul.mubr.bf16.gmra.mrb[0].mxu0 %v193
      %v284 = vpop.f32.mrb[0].mxu0
      %v285 = vadd.f32 0.0, %v284
      %v286 = vpop.f32.mrb[0].mxu0
      %v287 = vpop.f32.mrb[0].mxu0
      %v288 = vadd.f32 0.0, %v287
      %v289 = vpop.f32.mrb[0].mxu0
      %290 = vmatprep.mubr.bf16.mxu0 0
      %291 = vmatmul.mubr.bf16.gmra.mrb[0].mxu0 %v196
      %v292 = vpop.f32.mrb[0].mxu0
      %v293 = vadd.f32 0.0, %v292
      %v294 = vpop.f32.mrb[0].mxu0
      %v295 = vpop.f32.mrb[0].mxu0
      %v296 = vadd.f32 0.0, %v295
      %v297 = vpop.f32.mrb[0].mxu0
      %298 = vdwg.mxu0
      %v299 = vpack.c.bf16 %v240, %v237
      %v300 = vpack.c.bf16 %v248, %v245
      %v301 = vpack.c.bf16 %v256, %v253
      %v302 = vpack.c.bf16 %v264, %v261
      %v303 = vpack.c.bf16 %v272, %v269
      %v304 = vpack.c.bf16 %v280, %v277
      %v305 = vpack.c.bf16 %v288, %v285
      %v306 = vpack.c.bf16 %v296, %v293
      %v315 = vunpack.c.l.b16 %v299
      %v316 = vunpack.c.h.b16 %v299
      %v317 = vunpack.c.l.b16 %v300
      %v318 = vunpack.c.h.b16 %v300
      %v319 = vunpack.c.l.b16 %v301
      %v320 = vunpack.c.h.b16 %v301
      %v321 = vunpack.c.l.b16 %v302
      %v322 = vunpack.c.h.b16 %v302
      %v323 = vunpack.c.l.b16 %v303
      %v324 = vunpack.c.h.b16 %v303
      %v325 = vunpack.c.l.b16 %v304
      %v326 = vunpack.c.h.b16 %v304
      %v327 = vunpack.c.l.b16 %v305
      %v328 = vunpack.c.h.b16 %v305
      %v329 = vunpack.c.l.b16 %v306
      %v330 = vunpack.c.h.b16 %v306
      %v331 = vpack.c.b16 %v315, %v315
      %v332 = vpack.c.b16 %v316, %v316
      %v333 = vpack.c.b16 %v317, %v317
      %v334 = vpack.c.b16 %v318, %v318
      %v335 = vpack.c.b16 %v319, %v319
      %v336 = vpack.c.b16 %v320, %v320
      %v337 = vpack.c.b16 %v321, %v321
      %v338 = vpack.c.b16 %v322, %v322
      %v339 = vpack.c.b16 %v323, %v323
      %v340 = vpack.c.b16 %v324, %v324
      %v341 = vpack.c.b16 %v325, %v325
      %v342 = vpack.c.b16 %v326, %v326
      %v343 = vpack.c.b16 %v327, %v327
      %v344 = vpack.c.b16 %v328, %v328
      %v345 = vpack.c.b16 %v329, %v329
      %v346 = vpack.c.b16 %v330, %v330
      %vm363 = vcmask 519168
      %364 = vst.msk [vmem:[%s145] sm:$0xf] %vm363, %v331
      %365 = vst.msk [vmem:[%s145 + $0x4] sm:$0xf] %vm363, %v332
      %366 = vst.msk [vmem:[%s145 + $0x8] sm:$0xf] %vm363, %v333
      %367 = vst.msk [vmem:[%s145 + $0xc] sm:$0xf] %vm363, %v334
      %368 = vst.msk [vmem:[%s145 + $0x10] sm:$0xf] %vm363, %v335
      %369 = vst.msk [vmem:[%s145 + $0x14] sm:$0xf] %vm363, %v336
      %370 = vst.msk [vmem:[%s145 + $0x18] sm:$0xf] %vm363, %v337
      %371 = vst.msk [vmem:[%s145 + $0x1c] sm:$0xf] %vm363, %v338
      %372 = vst.msk [vmem:[%s145 + $0x20] sm:$0xf] %vm363, %v339
      %373 = vst.msk [vmem:[%s145 + $0x24] sm:$0xf] %vm363, %v340
      %374 = vst.msk [vmem:[%s145 + $0x28] sm:$0xf] %vm363, %v341
      %375 = vst.msk [vmem:[%s145 + $0x2c] sm:$0xf] %vm363, %v342
      %376 = vst.msk [vmem:[%s145 + $0x30] sm:$0xf] %vm363, %v343
      %377 = vst.msk [vmem:[%s145 + $0x34] sm:$0xf] %vm363, %v344
      %378 = vst.msk [vmem:[%s145 + $0x38] sm:$0xf] %vm363, %v345
      %379 = vst.msk [vmem:[%s145 + $0x3c] sm:$0xf] %vm363, %v346
      %s380 = smul.u32 16, %s13
      %p381 = scmp.lt.s32.totalorder %s380, 31
      %s382 = scalar_select %p381, %s380, 31
      %s383 = smul.addr %s382, 4
      %s384 = scalar_lea.vmem %s2, %s383
      // Predicated region
      $region29: #{tpu_custom_call.1} parent=27 // pred_check
        %p385 = pneg %p78
      $region30: #{tpu_custom_call.1} parent=27 // pred_check_branch
        %387 = sbr.rel (%p385) target = $region32
      $region31: #{tpu_custom_call.1} parent=27 // pred_region
        %s388 = smul.u32 16, %s13
      $region32: #{tpu_custom_call.1} parent=27 // pred_fallthru
        _
    $region28: #{tpu_custom_call.1} parent=5 // pred_fallthru
      _
    %p389 = scmp.le.s32.totalorder 2, %s8
    // Predicated region
    $region33: #{tpu_custom_call.1} parent=5 // pred_check
      %p390 = pneg %p389
    $region34: #{tpu_custom_call.1} parent=5 // pred_check_branch
      %392 = sbr.rel (%p390) target = $region36
    $region35: #{tpu_custom_call.1} parent=5 // pred_region
      %s393 = ssub.s32 %s8, 2
      // Predicated region
      $region37: #{tpu_custom_call.1} parent=35 // pred_check
        %p394 = pneg %p84
      $region38: #{tpu_custom_call.1} parent=35 // pred_check_branch
        %396 = sbr.rel (%p394) target = $region40
      $region39: #{tpu_custom_call.1} parent=35 // pred_region
        %s397 = smul.u32 16, %s14
        %p398 = scmp.lt.s32.totalorder %s397, 31
        %s399 = scalar_select %p398, %s397, 31
        %s400 = smul.addr %s399, 4
        %s401 = scalar_lea.vmem %s2, %s400
      $region40: #{tpu_custom_call.1} parent=35 // pred_fallthru
        _
    $region36: #{tpu_custom_call.1} parent=5 // pred_fallthru
      _
  $region6: #{tpu_custom_call.1} parent=0 // loop_footer
    %s12 = sadd.s32 1, %s8
  $region7: #{tpu_custom_call.1} parent=0 // loop_footer_branch
    %7 = sbr.rel target = $region3
  $region8: #{tpu_custom_call.1} parent=0 // loop_exit
    _

</llo_original>
